<compile_context>
chip_gen: v6e
topology: v6e:2x2x1
jax: 0.10.0
libtpu: 0.0.40
codegen_flags: <defaults>
</compile_context>

<pallas_src>
import functools

import jax
import jax.numpy as jnp
from jax.experimental import pallas as pl
from jax.experimental.pallas import tpu as pltpu


def _round_up(x, m):
    return (x + m - 1) // m * m


def _focal_loss_kernel(*refs, gamma, n_total, has_weights):
    if has_weights:
        logits_ref, tgt_ref, w_ref, out_ref = refs
    else:
        logits_ref, tgt_ref, out_ref = refs
        w_ref = None

    i = pl.program_id(0)

    logits = logits_ref[...].astype(jnp.float32)            # (bn, C), one cast per tile
    tgt = tgt_ref[...]                                       # (bn, 1) int32
    bn, C = logits.shape

    cls = jax.lax.broadcasted_iota(jnp.int32, (bn, C), 1)    # lane (class) iota
    onehot = (cls == tgt).astype(jnp.float32)                # (bn, C)

    # Numerically stable log-softmax over the class (lane) axis; only the
    # target-class quantities are materialized at (bn, 1) width.
    m = jnp.max(logits, axis=1, keepdims=True)               # (bn, 1)
    z = logits - m                                           # (bn, C)
    denom = jnp.sum(jnp.exp(z), axis=1, keepdims=True)       # (bn, 1), >= 1
    z_t = jnp.sum(z * onehot, axis=1, keepdims=True)         # (bn, 1)
    logp_t = z_t - jnp.log(denom)                            # log p(target)
    p_t = jnp.exp(logp_t)                                    # p(target)

    ce = -logp_t                                             # CE, reduction='none'
    if has_weights:
        ce = ce * w_ref[...].astype(jnp.float32)             # weights[target] per sample

    one_m = 1.0 - p_t
    if isinstance(gamma, int) and gamma >= 0:
        fp = jnp.ones_like(one_m)                            # integer power: VPU muls only
        for _ in range(gamma):
            fp = fp * one_m
    else:
        fp = one_m ** gamma
    focal = fp * ce                                          # (bn, 1)

    # Defensive mask of tail rows of the final partial block (their garbage
    # values are never written back anyway, since the OOB writeback is clipped).
    row = i * bn + jax.lax.broadcasted_iota(jnp.int32, (bn, 1), 0)
    focal = jnp.where(row < n_total, focal, 0.0)

    out_ref[...] = focal


def focal_loss(outputs, targets, weights=None, *, gamma=2, reduction="mean",
               block_n=None, vmem_budget_bytes=8 * 1024 * 1024):
    """Pallas TPU focal loss matching the PyTorch FocalLoss.forward.

    outputs: (N, C) float logits; targets: (N,) int; weights: optional (C,) float.
    """
    N, C = outputs.shape
    targets = targets.astype(jnp.int32)
    has_weights = weights is not None

    operands = [outputs, targets.reshape(N, 1)]
    if has_weights:
        # Cheap N-element gather once in the wrapper -> one fewer (bn, C)
        # multiply + lane reduce inside the kernel.
        w_t = jnp.asarray(weights, dtype=jnp.float32)[targets].reshape(N, 1)
        operands.append(w_t)

    if block_n is None:
        # Double-buffered (block_n, C) logits tile; C pads to 128 lanes in VMEM.
        itemsize = jnp.dtype(outputs.dtype).itemsize
        per_row = _round_up(C, 128) * itemsize
        rows = max(8, (vmem_budget_bytes // (2 * per_row)) // 8 * 8)
        block_n = int(min(4096, rows, _round_up(N, 8)))
    block_n = max(8, block_n // 8 * 8)
    # TODO(synk): for very large class counts C a class-tiled two-pass softmax
    # variant would be needed to keep the (block_n, C) tile in VMEM; not required
    # for typical classification class counts.

    n_blocks = pl.cdiv(N, block_n)

    in_specs = [
        pl.BlockSpec((block_n, C), lambda i: (i, 0)),
        pl.BlockSpec((block_n, 1), lambda i: (i, 0)),
    ]
    if has_weights:
        in_specs.append(pl.BlockSpec((block_n, 1), lambda i: (i, 0)))

    kernel = functools.partial(_focal_loss_kernel, gamma=gamma, n_total=N,
                               has_weights=has_weights)
    focal = pl.pallas_call(
        kernel,
        out_shape=jax.ShapeDtypeStruct((N, 1), jnp.float32),
        grid_spec=pltpu.PrefetchScalarGridSpec(
            num_scalar_prefetch=0,
            grid=(n_blocks,),
            in_specs=in_specs,
            out_specs=pl.BlockSpec((block_n, 1), lambda i: (i, 0)),
        ),
        compiler_params=pltpu.CompilerParams(
            # Independent blocks, no carried accumulator -> both cores usable.
            dimension_semantics=("parallel",),
        ),
    )(*operands)

    focal = focal[:, 0]
    if reduction == "mean":
        # Matches torch.mean(focal_loss): divide by N (not sum(weights[targets])).
        return jnp.mean(focal)
    elif reduction == "sum":
        return jnp.sum(focal)
    else:
        return focal


def _focal_loss_ref(outputs, targets, weights=None, gamma=2, reduction="mean"):
    logits = outputs.astype(jnp.float32)
    logp = jax.nn.log_softmax(logits, axis=1)
    probs = jax.nn.softmax(logits, axis=1)
    idx = jnp.arange(outputs.shape[0])
    if weights is None:
        w = jnp.ones(outputs.shape[1], jnp.float32)
    else:
        w = jnp.asarray(weights, jnp.float32)
    ce = -logp[idx, targets] * w[targets]
    gp = probs[idx, targets]
    fl = (1.0 - gp) ** gamma * ce
    if reduction == "mean":
        return jnp.mean(fl)
    if reduction == "sum":
        return jnp.sum(fl)
    return fl


if __name__ == "__main__":
    key = jax.random.PRNGKey(0)
    k1, k2, k3, k4 = jax.random.split(key, 4)

    # Case 1: weighted focal loss, small shapes consistent with the module.
    N, C = 16, 16
    outputs = jax.random.normal(k1, (N, C), dtype=jnp.float32)
    targets = jax.random.randint(k2, (N,), 0, C, dtype=jnp.int32)
    weights = 1.0 + 0.1 * jnp.arange(C, dtype=jnp.float32)

    loss = focal_loss(outputs, targets, weights, gamma=2)
    jax.block_until_ready(loss)
    ref = _focal_loss_ref(outputs, targets, weights, gamma=2)
    assert jnp.allclose(loss, ref, rtol=1e-5, atol=1e-6), (loss, ref)

    # Case 2: no weights, N not a multiple of the tile -> multi-block grid with a
    # partial final block (exercises in-kernel row masking + clipped writeback).
    N2, C2 = 300, 10
    outputs2 = jax.random.normal(k3, (N2, C2), dtype=jnp.float32)
    targets2 = jax.random.randint(k4, (N2,), 0, C2, dtype=jnp.int32)
    loss2 = focal_loss(outputs2, targets2, None, gamma=2, block_n=128)
    jax.block_until_ready(loss2)
    ref2 = _focal_loss_ref(outputs2, targets2, None, gamma=2)
    assert jnp.allclose(loss2, ref2, rtol=1e-5, atol=1e-6), (loss2, ref2)

    # Case 3: reduction='none' path matches elementwise.
    fl_none = focal_loss(outputs2, targets2, None, gamma=2, reduction="none", block_n=128)
    jax.block_until_ready(fl_none)
    ref_none = _focal_loss_ref(outputs2, targets2, None, gamma=2, reduction="none")
    assert jnp.allclose(fl_none, ref_none, rtol=1e-5, atol=1e-6)

    print("KERNEL_OK")
</pallas_src>

<mosaic_0001>
module attributes {stable_mosaic.version = 11 : i64} {
  func.func @_focal_loss_kernel(%arg0: i32, %arg1: memref<16x16xf32, #tpu.memory_space<vmem>>, %arg2: memref<16x1xi32, #tpu.memory_space<vmem>>, %arg3: memref<16x1xf32, #tpu.memory_space<vmem>>, %arg4: memref<16x1xf32, #tpu.memory_space<vmem>>) attributes {dimension_semantics = [#tpu.dimension_semantics<parallel>], iteration_bounds = array<i64: 1>, scalar_prefetch = 0 : i64, scratch_operands = 0 : i64, tpu.core_type = #tpu.core_type<tc>, window_params = [{transform_indices = @transform_0, window_bounds = array<i64: 16, 16>}, {transform_indices = @transform_1, window_bounds = array<i64: 16, 1>}, {transform_indices = @transform_2, window_bounds = array<i64: 16, 1>}, {transform_indices = @transform_3, window_bounds = array<i64: 16, 1>}]} {
    %c0 = arith.constant 0 : index
    %c0_0 = arith.constant 0 : index
    %0 = vector.load %arg1[%c0, %c0_0] : memref<16x16xf32, #tpu.memory_space<vmem>>, vector<16x16xf32>
    %c0_1 = arith.constant 0 : index
    %c0_2 = arith.constant 0 : index
    %1 = vector.load %arg2[%c0_1, %c0_2] : memref<16x1xi32, #tpu.memory_space<vmem>>, vector<16x1xi32>
    %2 = tpu.iota {dimensions = array<i32: 1>} : vector<16x16xi32>
    %3 = vector.broadcast %1 : vector<16x1xi32> to vector<16x16xi32>
    %4 = arith.cmpi eq, %2, %3 : vector<16x16xi32>
    %5 = arith.extui %4 : vector<16x16xi1> to vector<16x16xi32>
    %6 = arith.sitofp %5 : vector<16x16xi32> to vector<16x16xf32>
    %cst = arith.constant dense<0xFF800000> : vector<16xf32>
    %7 = vector.multi_reduction <maximumf>, %0, %cst [1] : vector<16x16xf32> to vector<16xf32>
    %8 = vector.shape_cast %7 : vector<16xf32> to vector<16x1xf32>
    %9 = vector.broadcast %8 : vector<16x1xf32> to vector<16x16xf32>
    %10 = arith.subf %0, %9 : vector<16x16xf32>
    %11 = math.exp %10 : vector<16x16xf32>
    %cst_3 = arith.constant dense<0.000000e+00> : vector<16xf32>
    %12 = vector.multi_reduction <add>, %11, %cst_3 [1] : vector<16x16xf32> to vector<16xf32>
    %13 = vector.shape_cast %12 : vector<16xf32> to vector<16x1xf32>
    %14 = arith.mulf %10, %6 : vector<16x16xf32>
    %cst_4 = arith.constant dense<0.000000e+00> : vector<16xf32>
    %15 = vector.multi_reduction <add>, %14, %cst_4 [1] : vector<16x16xf32> to vector<16xf32>
    %16 = vector.shape_cast %15 : vector<16xf32> to vector<16x1xf32>
    %17 = math.log %13 : vector<16x1xf32>
    %18 = arith.subf %16, %17 : vector<16x1xf32>
    %19 = math.exp %18 : vector<16x1xf32>
    %cst_5 = arith.constant 0.000000e+00 : f32
    %20 = vector.broadcast %cst_5 : f32 to vector<16x1xf32>
    %21 = arith.subf %20, %18 : vector<16x1xf32>
    %c0_6 = arith.constant 0 : index
    %c0_7 = arith.constant 0 : index
    %22 = vector.load %arg3[%c0_6, %c0_7] : memref<16x1xf32, #tpu.memory_space<vmem>>, vector<16x1xf32>
    %23 = arith.mulf %21, %22 : vector<16x1xf32>
    %cst_8 = arith.constant 1.000000e+00 : f32
    %24 = vector.broadcast %cst_8 : f32 to vector<16x1xf32>
    %25 = arith.subf %24, %19 : vector<16x1xf32>
    %cst_9 = arith.constant 1.000000e+00 : f32
    %26 = vector.broadcast %cst_9 : f32 to vector<16x1xf32>
    %27 = arith.mulf %26, %25 : vector<16x1xf32>
    %28 = arith.mulf %27, %25 : vector<16x1xf32>
    %29 = arith.mulf %28, %23 : vector<16x1xf32>
    %c16_i32 = arith.constant 16 : i32
    %30 = arith.muli %arg0, %c16_i32 : i32
    %31 = tpu.iota {dimensions = array<i32: 0>} : vector<16x1xi32>
    %32 = vector.broadcast %30 : i32 to vector<16x1xi32>
    %33 = arith.addi %32, %31 : vector<16x1xi32>
    %c16_i32_10 = arith.constant 16 : i32
    %34 = vector.broadcast %c16_i32_10 : i32 to vector<16x1xi32>
    %35 = arith.cmpi slt, %33, %34 : vector<16x1xi32>
    %cst_11 = arith.constant 0.000000e+00 : f32
    %36 = vector.broadcast %cst_11 : f32 to vector<16x1xf32>
    %37 = arith.select %35, %29, %36 : vector<16x1xi1>, vector<16x1xf32>
    %c0_12 = arith.constant 0 : index
    %c0_13 = arith.constant 0 : index
    %38 = vector.load %arg4[%c0_12, %c0_13] : memref<16x1xf32, #tpu.memory_space<vmem>>, vector<16x1xf32>
    tpu.vector_store %arg4[%c0_12, %c0_13], %37 {strides = array<i32>} : memref<16x1xf32, #tpu.memory_space<vmem>>, vector<16x1xf32>,
    return
  }
  func.func @transform_0(%arg0: i32) -> (i32, i32) {
    %c0_i32 = arith.constant 0 : i32
    %c0_i32_0 = arith.constant 0 : i32
    return %arg0, %c0_i32 : i32, i32
  }
  func.func @transform_1(%arg0: i32) -> (i32, i32) {
    %c0_i32 = arith.constant 0 : i32
    %c0_i32_0 = arith.constant 0 : i32
    return %arg0, %c0_i32 : i32, i32
  }
  func.func @transform_2(%arg0: i32) -> (i32, i32) {
    %c0_i32 = arith.constant 0 : i32
    %c0_i32_0 = arith.constant 0 : i32
    return %arg0, %c0_i32 : i32, i32
  }
  func.func @transform_3(%arg0: i32) -> (i32, i32) {
    %c0_i32 = arith.constant 0 : i32
    %c0_i32_0 = arith.constant 0 : i32
    return %arg0, %c0_i32 : i32, i32
  }
}

</mosaic_0001>

<llo_original>
// kernel: tpu_custom_call.1
$region0: #{tpu_custom_call.1}
  #allocation0 [shape = 'u32[]', space=smem, size = 0x4, offset = 0x4, fixed_abs, tag = 'smem constant byte address 0x4 - core index']
  #allocation1 [shape = 'u32[144,128]{1,0:T(1,128)}', space=vmem, size = 0x12000, scoped, tag = 'internal scratch']
  %s0 = inlined_call_operand.vmem [shape: f32[16,16], index: 0, kind: input, shape index: {}]
  %s1 = inlined_call_operand.vmem [shape: s32[16,1], index: 1, kind: input, shape index: {}]
  %s2 = inlined_call_operand.vmem [shape: f32[16,1], index: 2, kind: input, shape index: {}]
  %s3 = inlined_call_operand.vmem [shape: f32[16,1], index: 3, kind: output, shape index: {}]
  %s4 = sld [smem:[#allocation0]]
  $region22: #{tpu_custom_call.1} parent=0
    _
  %s6 = ssub.s32 1, %s4
  %s7 = scalar_select 0, %s6, %s4
  // Predicated region
  $region2: #{tpu_custom_call.1} parent=0 // pred_check
    _
  $region3: #{tpu_custom_call.1} parent=0 // pred_check_branch
    %9 = sbr.rel (0) target = $region5
  $region4: #{tpu_custom_call.1} parent=0 // pred_region
    _
  $region5: #{tpu_custom_call.1} parent=0 // pred_fallthru
    _
  // Predicated region
  $region6: #{tpu_custom_call.1} parent=0 // pred_check
    _
  $region7: #{tpu_custom_call.1} parent=0 // pred_check_branch
    %11 = sbr.rel (0) target = $region9
  $region8: #{tpu_custom_call.1} parent=0 // pred_region
    _
  $region9: #{tpu_custom_call.1} parent=0 // pred_fallthru
    _
  // Predicated region
  $region10: #{tpu_custom_call.1} parent=0 // pred_check
    _
  $region11: #{tpu_custom_call.1} parent=0 // pred_check_branch
    %13 = sbr.rel (0) target = $region13
  $region12: #{tpu_custom_call.1} parent=0 // pred_region
    _
  $region13: #{tpu_custom_call.1} parent=0 // pred_fallthru
    _
  %v14 = vld [vmem:[%s0] sm:$0xff]
  %v15 = vld [vmem:[%s0 + $0x8] sm:$0xff]
  %v16 = vld [vmem:[%s1] sm:$0xff]
  %v17 = vld [vmem:[%s1 + $0x8] sm:$0xff]
  %v18 = vlaneseq
  %v19 = vand.u32 %v18, 127
  %20 = vset.pattern.permute.xlu0 0
  %21 = vperm.xlu0 %20, %v16
  %v22 = vpop.permute.xlu0 %21
  %23 = vset.pattern.permute.xlu0 0
  %24 = vperm.xlu0 %23, %v17
  %v25 = vpop.permute.xlu0 %24
  %vm26 = vcmp.eq.s32.totalorder %v19, %v22
  %vm27 = vcmp.eq.s32.totalorder %v19, %v25
  %v28 = vsel %vm26, 1, 0
  %v29 = vsel %vm27, 1, 0
  %v30 = vcvt.s32.f32 %v28
  %v31 = vcvt.s32.f32 %v29
  %vm32 = vcmask 130048
  %v33 = vsel %vm32, %v14, -inf
  %34 = vmax.xlane.f32.xlu0 %v33
  %v35 = vpop.xlane.xlu0 %34
  %v36 = vsel %vm32, %v15, -inf
  %37 = vmax.xlane.f32.xlu0 %v36
  %v38 = vpop.xlane.xlu0 %37
  %v39 = vsub.f32 %v14, %v35
  %v40 = vsub.f32 %v15, %v38
  %v41 = vmul.f32 %v39, 1.442695
  %v42 = vpow.pop %v41
  %v43 = vmul.f32 %v40, 1.442695
  %v44 = vpow.pop %v43
  %v45 = vsel %vm32, %v42, 0.0
  %46 = vadd.xlane.f32.xlu0 %v45
  %v47 = vpop.xlane.xlu0 %46
  %v48 = vsel %vm32, %v44, 0.0
  %49 = vadd.xlane.f32.xlu0 %v48
  %v50 = vpop.xlane.xlu0 %49
  %v51 = vmul.f32 %v39, %v30
  %v52 = vmul.f32 %v40, %v31
  %v53 = vsel %vm32, %v51, 0.0
  %54 = vadd.xlane.f32.xlu0 %v53
  %v55 = vpop.xlane.xlu0 %54
  %v56 = vsel %vm32, %v52, 0.0
  %57 = vadd.xlane.f32.xlu0 %v56
  %v58 = vpop.xlane.xlu0 %57
  %v59 = vlog2.pop %v47
  %v60 = vmul.f32 %v59, 0.6931472
  %v61 = vlog2.pop %v50
  %v62 = vmul.f32 %v61, 0.6931472
  %v63 = vsub.f32 %v55, %v60
  %v64 = vsub.f32 %v58, %v62
  %v65 = vmul.f32 %v63, 1.442695
  %v66 = vpow.pop %v65
  %v67 = vmul.f32 %v64, 1.442695
  %v68 = vpow.pop %v67
  %v69 = vsub.f32 0.0, %v63
  %v70 = vsub.f32 0.0, %v64
  %v71 = vld [vmem:[%s2] sm:$0xff]
  %v72 = vld [vmem:[%s2 + $0x8] sm:$0xff]
  %v73 = vmul.f32 %v69, %v71
  %v74 = vmul.f32 %v70, %v72
  %v75 = vsub.f32 1.0, %v66
  %v76 = vsub.f32 1.0, %v68
  %v77 = vmul.f32 %v75, %v75
  %v78 = vmul.f32 %v76, %v76
  %v79 = vmul.f32 %v77, %v73
  %v80 = vmul.f32 %v78, %v74
  %s81 = smul.u32 0, 16
  %v82 = vlaneseq
  %v83 = vshrl.u32 %v82, 7
  %v84 = vadd.s32 %v83, 8
  %v85 = vstv %s81
  %v86 = vadd.s32 %v85, %v83
  %v87 = vadd.s32 %v85, %v84
  %vm88 = vcmp.lt.s32.totalorder %v86, 16
  %vm89 = vcmp.lt.s32.totalorder %v87, 16
  %v90 = vsel %vm88, %v79, 0.0
  %v91 = vsel %vm89, %v80, 0.0
  %vm92 = vcmask 7168
  %93 = vst.msk [vmem:[%s3] sm:$0xff] %vm92, %v90
  %94 = vst.msk [vmem:[%s3 + $0x8] sm:$0xff] %vm92, %v91
  // Predicated region
  $region14: #{tpu_custom_call.1} parent=0 // pred_check
    _
  $region15: #{tpu_custom_call.1} parent=0 // pred_check_branch
    %96 = sbr.rel (0) target = $region17
  $region16: #{tpu_custom_call.1} parent=0 // pred_region
    _
  $region17: #{tpu_custom_call.1} parent=0 // pred_fallthru
    _
  // Predicated region
  $region18: #{tpu_custom_call.1} parent=0 // pred_check
    _
  $region19: #{tpu_custom_call.1} parent=0 // pred_check_branch
    %98 = sbr.rel (0) target = $region21
  $region20: #{tpu_custom_call.1} parent=0 // pred_region
    _
  $region21: #{tpu_custom_call.1} parent=0 // pred_fallthru
    _

</llo_original>
